<compile_context>
chip_gen: v7x
topology: tpu7x:2x2x1
jax: 0.10.0
libtpu: 0.0.40
codegen_flags: <defaults>
</compile_context>

<pallas_src>
import math

import jax
import jax.numpy as jnp
from jax.experimental import pallas as pl
from jax.experimental.pallas import tpu as pltpu


# ---------------------------- model dimensions ----------------------------
STATE_DIM = 6
ACTION_DIM = 2
N_INPUT = STATE_DIM + ACTION_DIM          # input_shape[-1] = 8
N_FEATURES = (64, 64)                     # hidden sizes of each MLP
N_OUTPUT = 1                              # output_shape[0]

HID = N_FEATURES[0]                       # 64 (per net)
COMB = 2 * HID                            # 128 (mu + sigma nets fused)
LANES = 128                               # slab lane width
K_PAD = 16                                # sa padded 8 -> 16 input columns
OUT_W = 2                                 # lane 0 = mu, lane 1 = sigma

# --- packed slab row layout (every segment start/size is a multiple of 16 so
#     all bf16 ref slices are whole (16,128) tiles) ---
W2_START, W2_END = 0, COMB                      # rows   0..127 : block-diag layer 2
W1_START, W1_END = W2_END, W2_END + K_PAD       # rows 128..143 : layer 1 (8 real + 8 zero rows)
AUX_START, AUX_END = W1_END, W1_END + 16        # rows 144..159 : biases + head rows
SLAB_ROWS = AUX_END                             # 160

# aux sub-rows (within the AUX block)
AUX_B1 = 0      # layer-1 bias, 128 lanes
AUX_B2 = 1      # layer-2 bias, 128 lanes
AUX_W3MU = 2    # mu head weights in lanes 0..63, zeros elsewhere
AUX_W3SG = 3    # sigma head weights in lanes 64..127, zeros elsewhere
AUX_B3 = 4      # lane 0 = mu head bias, lane 1 = sigma head bias

BATCH = 2


# ------------------------------- kernel -----------------------------------
def _gcq_kernel(sa_ref, w_ref, out_ref):
    f32 = jnp.float32
    bf16 = jnp.bfloat16

    # Static, tile-aligned slices into the single resident parameter slab.
    w1 = w_ref[W1_START:W1_END, :]                     # (16, 128) bf16
    w2 = w_ref[W2_START:W2_END, :]                     # (128, 128) bf16
    aux = w_ref[AUX_START:AUX_END, :].astype(f32)      # (16, 128) f32

    b1 = aux[AUX_B1:AUX_B1 + 1, :]                     # (1, 128)
    b2 = aux[AUX_B2:AUX_B2 + 1, :]
    w3mu = aux[AUX_W3MU:AUX_W3MU + 1, :]               # masked head rows
    w3sg = aux[AUX_W3SG:AUX_W3SG + 1, :]
    b3mu = aux[AUX_B3:AUX_B3 + 1, 0:1]                 # (1, 1)
    b3sg = aux[AUX_B3:AUX_B3 + 1, 1:2]

    # ----- layers 1 & 2: bf16 MXU matmuls, f32 accumulation -----
    sa = sa_ref[...].astype(bf16)                      # (rows, 16)
    h = jnp.dot(sa, w1, preferred_element_type=f32) + b1
    h = jnp.maximum(h, 0.0)
    h = jnp.dot(h.astype(bf16), w2, preferred_element_type=f32) + b2
    h = jnp.maximum(h, 0.0)                            # (rows, 128) f32

    # ----- layer 3 heads: VPU multiply + XLU cross-lane reduce (no MXU pass) -----
    mu = jnp.sum(h * w3mu, axis=-1, keepdims=True) + b3mu        # (rows, 1)
    zs = jnp.sum(h * w3sg, axis=-1, keepdims=True) + b3sg        # (rows, 1)
    # stable softplus only on the sigma column
    sig = jnp.maximum(zs, 0.0) + jnp.log(1.0 + jnp.exp(-jnp.abs(zs)))

    out_ref[:, 0:1] = mu
    out_ref[:, 1:2] = sig


# ------------------------------ wrapper ------------------------------------
def _row_block(batch):
    """Row-block size: big blocks (<=1024) to amortize per-step overhead, but
    at least 2 grid steps once B exceeds one block so v7x's 2 TCs both work."""
    cap = 1024
    target = max(16, (batch + 1) // 2)          # ceil(B/2), floor of one bf16 tile
    return min(cap, ((target + 15) // 16) * 16)  # multiple of 16 (bf16 sublane tile)


def gaussian_constraint_q_forward(state, action, slab):
    """Returns (mu, sigma) with shapes (B,), (B,) — matching torch .squeeze()."""
    sa = jnp.concatenate(
        [state.astype(jnp.float32), action.astype(jnp.float32)], axis=1)   # (B, 8)
    B = sa.shape[0]

    block_rows = _row_block(B)
    b_pad = pl.cdiv(B, block_rows) * block_rows
    # single fused pad: rows -> b_pad, cols 8 -> 16 (extra K columns are zero)
    sa_pad = jnp.pad(sa, ((0, b_pad - B), (0, K_PAD - N_INPUT)))

    out = pl.pallas_call(
        _gcq_kernel,
        out_shape=jax.ShapeDtypeStruct((b_pad, OUT_W), jnp.float32),
        grid=(b_pad // block_rows,),
        in_specs=[
            pl.BlockSpec((block_rows, K_PAD), lambda i: (i, 0)),      # activations
            pl.BlockSpec((SLAB_ROWS, LANES), lambda i: (0, 0)),       # resident params
        ],
        out_specs=pl.BlockSpec((block_rows, OUT_W), lambda i: (i, 0)),
        compiler_params=pltpu.CompilerParams(
            dimension_semantics=("parallel",)),
    )(sa_pad, slab)

    mu = out[:B, 0]
    sigma = out[:B, 1]
    return mu, sigma


# -------------------------- parameter construction -------------------------
def _xavier_relu_linear(key, fan_in, fan_out):
    """xavier_uniform(gain=sqrt(2)) weights (weight_init), default Linear bias."""
    kw, kb = jax.random.split(key)
    gain = math.sqrt(2.0)
    limit = gain * math.sqrt(6.0 / (fan_in + fan_out))
    w = jax.random.uniform(kw, (fan_in, fan_out), jnp.float32, -limit, limit)
    b_bound = 1.0 / math.sqrt(fan_in)
    b = jax.random.uniform(kb, (1, fan_out), jnp.float32, -b_bound, b_bound)
    return w, b


def make_params(key):
    """Raw per-layer params for the mu net and the sigma net."""
    keys = jax.random.split(key, 6)

    def mlp(ks):
        w1, b1 = _xavier_relu_linear(ks[0], N_INPUT, N_FEATURES[0])
        w2, b2 = _xavier_relu_linear(ks[1], N_FEATURES[0], N_FEATURES[1])
        w3, b3 = _xavier_relu_linear(ks[2], N_FEATURES[1], N_OUTPUT)
        return (w1, b1, w2, b2, w3, b3)

    return mlp(keys[:3]), mlp(keys[3:])


def pack_params(raw_params):
    """Pack both MLPs (weights + biases + head rows) into ONE bf16 slab (160, 128)."""
    (mw1, mb1, mw2, mb2, mw3, mb3), (sw1, sb1, sw2, sb2, sw3, sb3) = raw_params
    f32 = jnp.float32

    # layer 1: side-by-side, padded to 16 K-rows (rows 8..15 zero)
    w1c = jnp.zeros((K_PAD, COMB), f32)
    w1c = w1c.at[:N_INPUT, :HID].set(mw1).at[:N_INPUT, HID:].set(sw1)

    # layer 2: block-diagonal
    w2c = jnp.zeros((COMB, COMB), f32)
    w2c = w2c.at[:HID, :HID].set(mw2).at[HID:, HID:].set(sw2)

    # aux rows: biases + masked layer-3 head rows
    aux = jnp.zeros((AUX_END - AUX_START, LANES), f32)
    aux = aux.at[AUX_B1, :HID].set(mb1[0]).at[AUX_B1, HID:].set(sb1[0])
    aux = aux.at[AUX_B2, :HID].set(mb2[0]).at[AUX_B2, HID:].set(sb2[0])
    aux = aux.at[AUX_W3MU, :HID].set(mw3[:, 0])
    aux = aux.at[AUX_W3SG, HID:].set(sw3[:, 0])
    aux = aux.at[AUX_B3, 0].set(mb3[0, 0]).at[AUX_B3, 1].set(sb3[0, 0])

    slab = jnp.concatenate([w2c, w1c, aux], axis=0)        # (160, 128)
    return slab.astype(jnp.bfloat16)


# --------------------------- references -------------------------------------
def _softplus(x):
    return jnp.maximum(x, 0.0) + jnp.log(1.0 + jnp.exp(-jnp.abs(x)))


def reference_forward(state, action, raw_params):
    """True f32 semantics of the PyTorch module."""
    mu_p, sig_p = raw_params
    sa = jnp.concatenate(
        [state.astype(jnp.float32), action.astype(jnp.float32)], axis=1)

    def mlp(p):
        w1, b1, w2, b2, w3, b3 = p
        h = jnp.maximum(sa @ w1 + b1, 0.0)
        h = jnp.maximum(h @ w2 + b2, 0.0)
        return h @ w3 + b3                                  # (B, 1)

    mu = jnp.squeeze(mlp(mu_p), axis=-1)
    sigma = jnp.squeeze(_softplus(mlp(sig_p)), axis=-1)
    return mu, sigma


def kernel_math_reference(state, action, raw_params):
    """Emulates the kernel's exact numerics: bf16 params / bf16 matmul inputs,
    f32 accumulation, f32 head reduce + softplus."""
    bf16, f32 = jnp.bfloat16, jnp.float32
    up = lambda x: x.astype(bf16).astype(f32)
    mu_p, sig_p = raw_params
    sa = jnp.concatenate(
        [state.astype(f32), action.astype(f32)], axis=1).astype(bf16)

    def head(p):
        w1, b1, w2, b2, w3, b3 = p
        h = jnp.dot(sa, w1.astype(bf16), preferred_element_type=f32) + up(b1)
        h = jnp.maximum(h, 0.0)
        h = jnp.dot(h.astype(bf16), w2.astype(bf16),
                    preferred_element_type=f32) + up(b2)
        h = jnp.maximum(h, 0.0)
        return jnp.sum(h * up(w3[:, 0]), axis=-1) + up(b3[0, 0])

    mu = head(mu_p)
    sigma = _softplus(head(sig_p))
    return mu, sigma


# --------------------------------- main -------------------------------------
if __name__ == "__main__":
    key = jax.random.PRNGKey(0)
    k_state, k_action, k_params = jax.random.split(key, 3)

    state = jax.random.normal(k_state, (BATCH, STATE_DIM), jnp.float32)
    action = jax.random.normal(k_action, (BATCH, ACTION_DIM), jnp.float32)

    raw_params = make_params(k_params)
    slab = pack_params(raw_params)

    mu, sigma = gaussian_constraint_q_forward(state, action, slab)
    mu, sigma = jax.block_until_ready((mu, sigma))

    assert mu.shape == (BATCH,), mu.shape
    assert sigma.shape == (BATCH,), sigma.shape
    assert bool(jnp.all(sigma > 0.0)), "softplus output must be positive"

    # exact-math check (same bf16/f32 numerics as the kernel)
    mu_q, sigma_q = kernel_math_reference(state, action, raw_params)
    assert jnp.allclose(mu, mu_q, atol=1e-4, rtol=1e-4), (
        f"mu (matched) max abs diff {jnp.max(jnp.abs(mu - mu_q))}")
    assert jnp.allclose(sigma, sigma_q, atol=1e-4, rtol=1e-4), (
        f"sigma (matched) max abs diff {jnp.max(jnp.abs(sigma - sigma_q))}")

    # semantic sanity check vs the pure-f32 module (bf16 MXU tolerance)
    mu_ref, sigma_ref = reference_forward(state, action, raw_params)
    assert jnp.allclose(mu, mu_ref, atol=5e-2, rtol=5e-2), (
        f"mu (f32 ref) max abs diff {jnp.max(jnp.abs(mu - mu_ref))}")
    assert jnp.allclose(sigma, sigma_ref, atol=5e-2, rtol=5e-2), (
        f"sigma (f32 ref) max abs diff {jnp.max(jnp.abs(sigma - sigma_ref))}")

    print("KERNEL_OK")
</pallas_src>

<mosaic_0001>
module attributes {stable_mosaic.version = 11 : i64} {
  func.func @_gcq_kernel(%arg0: i32, %arg1: memref<16x16xf32, #tpu.memory_space<vmem>>, %arg2: memref<160x128xbf16, #tpu.memory_space<vmem>>, %arg3: memref<16x2xf32, #tpu.memory_space<vmem>>) attributes {dimension_semantics = [#tpu.dimension_semantics<parallel>], iteration_bounds = array<i64: 1>, scalar_prefetch = 0 : i64, scratch_operands = 0 : i64, tpu.core_type = #tpu.core_type<tc>, window_params = [{transform_indices = @transform_0, window_bounds = array<i64: 16, 16>}, {pipeline_mode = #tpu.pipeline_mode<synchronous>, transform_indices = @transform_1, window_bounds = array<i64: 160, 128>}, {transform_indices = @transform_2, window_bounds = array<i64: 16, 2>}]} {
    %c128 = arith.constant 128 : index
    %c0 = arith.constant 0 : index
    %0 = vector.load %arg2[%c128, %c0] : memref<160x128xbf16, #tpu.memory_space<vmem>>, vector<16x128xbf16>
    %c0_0 = arith.constant 0 : index
    %c0_1 = arith.constant 0 : index
    %1 = vector.load %arg2[%c0_0, %c0_1] : memref<160x128xbf16, #tpu.memory_space<vmem>>, vector<128x128xbf16>
    %c144 = arith.constant 144 : index
    %c0_2 = arith.constant 0 : index
    %2 = vector.load %arg2[%c144, %c0_2] : memref<160x128xbf16, #tpu.memory_space<vmem>>, vector<16x128xbf16>
    %3 = arith.extf %2 : vector<16x128xbf16> to vector<16x128xf32>
    %4 = vector.extract_strided_slice %3 {offsets = [0, 0], sizes = [1, 128], strides = [1, 1]} : vector<16x128xf32> to vector<1x128xf32>
    %5 = vector.extract_strided_slice %3 {offsets = [1, 0], sizes = [1, 128], strides = [1, 1]} : vector<16x128xf32> to vector<1x128xf32>
    %6 = vector.extract_strided_slice %3 {offsets = [2, 0], sizes = [1, 128], strides = [1, 1]} : vector<16x128xf32> to vector<1x128xf32>
    %7 = vector.extract_strided_slice %3 {offsets = [3, 0], sizes = [1, 128], strides = [1, 1]} : vector<16x128xf32> to vector<1x128xf32>
    %8 = vector.extract_strided_slice %3 {offsets = [4, 0], sizes = [1, 1], strides = [1, 1]} : vector<16x128xf32> to vector<1x1xf32>
    %9 = vector.extract_strided_slice %3 {offsets = [4, 1], sizes = [1, 1], strides = [1, 1]} : vector<16x128xf32> to vector<1x1xf32>
    %c0_3 = arith.constant 0 : index
    %c0_4 = arith.constant 0 : index
    %10 = vector.load %arg1[%c0_3, %c0_4] : memref<16x16xf32, #tpu.memory_space<vmem>>, vector<16x16xf32>
    %11 = arith.truncf %10 : vector<16x16xf32> to vector<16x16xbf16>
    %cst = arith.constant dense<0.000000e+00> : vector<16x128xf32>
    %12 = tpu.matmul %11, %0, %cst {dimension_numbers = #tpu.dot_dimension_numbers<[1], [0], [0], [1], [0, 0, 1, 1], [], []>} : vector<16x16xbf16>, vector<16x128xbf16>, vector<16x128xf32> -> vector<16x128xf32>
    %13 = vector.broadcast %4 : vector<1x128xf32> to vector<16x128xf32>
    %14 = arith.addf %12, %13 : vector<16x128xf32>
    %cst_5 = arith.constant 0.000000e+00 : f32
    %15 = vector.broadcast %cst_5 : f32 to vector<16x128xf32>
    %16 = arith.maximumf %14, %15 : vector<16x128xf32>
    %17 = arith.truncf %16 : vector<16x128xf32> to vector<16x128xbf16>
    %cst_6 = arith.constant dense<0.000000e+00> : vector<16x128xf32>
    %18 = tpu.matmul %17, %1, %cst_6 {dimension_numbers = #tpu.dot_dimension_numbers<[1], [0], [0], [1], [0, 0, 1, 1], [], []>} : vector<16x128xbf16>, vector<128x128xbf16>, vector<16x128xf32> -> vector<16x128xf32>
    %19 = vector.broadcast %5 : vector<1x128xf32> to vector<16x128xf32>
    %20 = arith.addf %18, %19 : vector<16x128xf32>
    %cst_7 = arith.constant 0.000000e+00 : f32
    %21 = vector.broadcast %cst_7 : f32 to vector<16x128xf32>
    %22 = arith.maximumf %20, %21 : vector<16x128xf32>
    %23 = vector.broadcast %6 : vector<1x128xf32> to vector<16x128xf32>
    %24 = arith.mulf %22, %23 : vector<16x128xf32>
    %cst_8 = arith.constant dense<0.000000e+00> : vector<16xf32>
    %25 = vector.multi_reduction <add>, %24, %cst_8 [1] : vector<16x128xf32> to vector<16xf32>
    %26 = vector.shape_cast %25 : vector<16xf32> to vector<16x1xf32>
    %27 = vector.broadcast %8 : vector<1x1xf32> to vector<16x1xf32>
    %28 = arith.addf %26, %27 : vector<16x1xf32>
    %29 = vector.broadcast %7 : vector<1x128xf32> to vector<16x128xf32>
    %30 = arith.mulf %22, %29 : vector<16x128xf32>
    %cst_9 = arith.constant dense<0.000000e+00> : vector<16xf32>
    %31 = vector.multi_reduction <add>, %30, %cst_9 [1] : vector<16x128xf32> to vector<16xf32>
    %32 = vector.shape_cast %31 : vector<16xf32> to vector<16x1xf32>
    %33 = vector.broadcast %9 : vector<1x1xf32> to vector<16x1xf32>
    %34 = arith.addf %32, %33 : vector<16x1xf32>
    %cst_10 = arith.constant 0.000000e+00 : f32
    %35 = vector.broadcast %cst_10 : f32 to vector<16x1xf32>
    %36 = arith.maximumf %34, %35 : vector<16x1xf32>
    %37 = math.absf %34 : vector<16x1xf32>
    %cst_11 = arith.constant 0.000000e+00 : f32
    %38 = vector.broadcast %cst_11 : f32 to vector<16x1xf32>
    %39 = arith.subf %38, %37 : vector<16x1xf32>
    %40 = math.exp %39 : vector<16x1xf32>
    %cst_12 = arith.constant 1.000000e+00 : f32
    %41 = vector.broadcast %cst_12 : f32 to vector<16x1xf32>
    %42 = arith.addf %41, %40 : vector<16x1xf32>
    %43 = math.log %42 : vector<16x1xf32>
    %44 = arith.addf %36, %43 : vector<16x1xf32>
    %c0_13 = arith.constant 0 : index
    %c0_14 = arith.constant 0 : index
    %45 = vector.load %arg3[%c0_13, %c0_14] : memref<16x2xf32, #tpu.memory_space<vmem>>, vector<16x1xf32>
    tpu.vector_store %arg3[%c0_13, %c0_14], %28 {strides = array<i32>} : memref<16x2xf32, #tpu.memory_space<vmem>>, vector<16x1xf32>,
    %c0_15 = arith.constant 0 : index
    %c1 = arith.constant 1 : index
    %46 = vector.load %arg3[%c0_15, %c1] : memref<16x2xf32, #tpu.memory_space<vmem>>, vector<16x1xf32>
    tpu.vector_store %arg3[%c0_15, %c1], %44 {strides = array<i32>} : memref<16x2xf32, #tpu.memory_space<vmem>>, vector<16x1xf32>,
    return
  }
  func.func @transform_0(%arg0: i32) -> (i32, i32) {
    %c0_i32 = arith.constant 0 : i32
    %c0_i32_0 = arith.constant 0 : i32
    return %arg0, %c0_i32 : i32, i32
  }
  func.func @transform_1(%arg0: i32) -> (i32, i32) {
    %c0_i32 = arith.constant 0 : i32
    %c0_i32_0 = arith.constant 0 : i32
    %c0_i32_1 = arith.constant 0 : i32
    return %c0_i32, %c0_i32_0 : i32, i32
  }
  func.func @transform_2(%arg0: i32) -> (i32, i32) {
    %c0_i32 = arith.constant 0 : i32
    %c0_i32_0 = arith.constant 0 : i32
    return %arg0, %c0_i32 : i32, i32
  }
}

</mosaic_0001>

<llo_original>
// kernel: tpu_custom_call.1
$region0: #{tpu_custom_call.1}
  #allocation0 [shape = 'u32[]', space=smem, size = 0x4, offset = 0x4, fixed_abs, tag = 'smem constant byte address 0x4 - core index']
  #allocation1 [shape = 'u32[144,128]{1,0:T(1,128)}', space=vmem, size = 0x12000, scoped, tag = 'internal scratch']
  %s0 = inlined_call_operand.hbm [shape: f32[16,16], index: 0, kind: input, shape index: {}]
  %s1 = inlined_call_operand.hbm [shape: bf16[160,128], index: 1, kind: input, shape index: {}]
  %s2 = inlined_call_operand.vmem [shape: f32[16,2], index: 2, kind: output, shape index: {}]
  %s3 = sld [smem:[#allocation0]]
  $region26: #{tpu_custom_call.1} parent=0
    _
  %s5 = ssub.s32 1, %s3
  %s6 = scalar_select 0, %s5, %s3
  $region1: #{tpu_custom_call.1} parent=0
    #allocation2 [shape = 'u8[8192]{0}', space=vmem, size = 0x2000, scoped, tag = 'input window, operand 0, single buffered']
    #allocation3 [shape = 's32[1]{0}', space=sflag, size = 0x4, scoped, tag = 'scoped memory for tpu_custom_call.1']
    #allocation4 [shape = 'u8[40960]{0}', space=vmem, size = 0xa000, scoped, tag = 'input window, operand 1, single buffered']
    #allocation5 [shape = 's32[1]{0}', space=sflag, size = 0x4, scoped, tag = 'scoped memory for tpu_custom_call.1']
    %7 = vsyncpa [#allocation3], 0
    %8 = vsyncpa [#allocation5], 0
    // Predicated region
    $region2: #{tpu_custom_call.1} parent=1 // pred_check
      _
    $region3: #{tpu_custom_call.1} parent=1 // pred_check_branch
      %10 = sbr.rel (0) target = $region5
    $region4: #{tpu_custom_call.1} parent=1 // pred_region
      %s12 = ssub.s32 256, 256
      %13 = vsyncadd [#allocation3], %s12
      %s14 = sshll.u32 [#allocation2], 4
      %s15 = int_to_ptr.vmem [resolvable:$true] %s14
      %20 = dma.hbm_to_vmem [thread:$0]  %s0, 256, %s15, [#allocation3], 128, 128, 8
    $region5: #{tpu_custom_call.1} parent=1 // pred_fallthru
      _
    // Predicated region
    $region6: #{tpu_custom_call.1} parent=1 // pred_check
      _
    $region7: #{tpu_custom_call.1} parent=1 // pred_check_branch
      %22 = sbr.rel (0) target = $region9
    $region8: #{tpu_custom_call.1} parent=1 // pred_region
      %s24 = ssub.s32 1280, 1280
      %25 = vsyncadd [#allocation5], %s24
      %s26 = sshll.u32 [#allocation4], 4
      %s27 = int_to_ptr.vmem [resolvable:$true] %s26
      %32 = dma.hbm_to_vmem [thread:$0]  %s1, 1280, %s27, [#allocation5], 64, 64, 4
    $region9: #{tpu_custom_call.1} parent=1 // pred_fallthru
      _
    // Predicated region
    $region10: #{tpu_custom_call.1} parent=1 // pred_check
      _
    $region11: #{tpu_custom_call.1} parent=1 // pred_check_branch
      %34 = sbr.rel (0) target = $region13
    $region12: #{tpu_custom_call.1} parent=1 // pred_region
      %35 = dma.done [#allocation3], 256
    $region13: #{tpu_custom_call.1} parent=1 // pred_fallthru
      _
    // Predicated region
    $region14: #{tpu_custom_call.1} parent=1 // pred_check
      _
    $region15: #{tpu_custom_call.1} parent=1 // pred_check_branch
      %37 = sbr.rel (0) target = $region17
    $region16: #{tpu_custom_call.1} parent=1 // pred_region
      %38 = dma.done [#allocation5], 1280
    $region17: #{tpu_custom_call.1} parent=1 // pred_fallthru
      _
    %v40 = vld [vmem:[#allocation4 + $0x40] sm:$0xf]
    %v41 = vld [vmem:[#allocation4 + $0x44] sm:$0xf]
    %v42 = vld [vmem:[#allocation4] sm:$0xf]
    %v43 = vld [vmem:[#allocation4 + $0x4] sm:$0xf]
    %v44 = vld [vmem:[#allocation4 + $0x8] sm:$0xf]
    %v45 = vld [vmem:[#allocation4 + $0xc] sm:$0xf]
    %v46 = vld [vmem:[#allocation4 + $0x10] sm:$0xf]
    %v47 = vld [vmem:[#allocation4 + $0x14] sm:$0xf]
    %v48 = vld [vmem:[#allocation4 + $0x18] sm:$0xf]
    %v49 = vld [vmem:[#allocation4 + $0x1c] sm:$0xf]
    %v50 = vld [vmem:[#allocation4 + $0x20] sm:$0xf]
    %v51 = vld [vmem:[#allocation4 + $0x24] sm:$0xf]
    %v52 = vld [vmem:[#allocation4 + $0x28] sm:$0xf]
    %v53 = vld [vmem:[#allocation4 + $0x2c] sm:$0xf]
    %v54 = vld [vmem:[#allocation4 + $0x30] sm:$0xf]
    %v55 = vld [vmem:[#allocation4 + $0x34] sm:$0xf]
    %v56 = vld [vmem:[#allocation4 + $0x38] sm:$0xf]
    %v57 = vld [vmem:[#allocation4 + $0x3c] sm:$0xf]
    %v58 = vld [vmem:[#allocation4 + $0x48] sm:$0xf]
    %v59 = vunpack.c.l.bf16 %v58
    %v60 = vld [vmem:[#allocation2] sm:$0xff]
    %v61 = vld [vmem:[#allocation2 + $0x8] sm:$0xff]
    %v62 = vpack.c.bf16 %v61, %v60
    %v63 = vlaneseq
    %v64 = vshrl.u32 %v63, 7
    %v65 = vsub.s32 0, %v64
    %v66 = vrot.slane %v59, %v65
    %v69 = vunpack.c.l.b16 %v40
    %v70 = vunpack.c.l.b16 %v41
    %v71 = vpack.c.b16 %v70, %v69
    %vm73 = vcmask 130048
    %v75 = vsel %vm73, %v62, 0
    %77 = vmatprep.subr.bf16.mxu0 0
    %78 = vmatpush1.bf16.msra.mxu0 %v71
    %79 = vmatprep.subr.bf16.mxu0 0
    %80 = vmatpush1.bf16.msra.mxu0 0
    %81 = vmatprep.subr.bf16.mxu0 0
    %82 = vmatpush1.bf16.msra.mxu0 0
    %83 = vmatprep.subr.bf16.mxu0 0
    %84 = vmatpush1.bf16.msra.mxu0 0
    %85 = vmatprep.subr.bf16.mxu0 0
    %86 = vmatpush1.bf16.msra.mxu0 0
    %87 = vmatprep.subr.bf16.mxu0 0
    %88 = vmatpush1.bf16.msra.mxu0 0
    %89 = vmatprep.subr.bf16.mxu0 0
    %90 = vmatpush1.bf16.msra.mxu0 0
    %91 = vmatprep.subr.bf16.mxu0 0
    %92 = vmatpush1.bf16.msra.mxu0 0
    %93 = vmatprep.subr.bf16.mxu0 0
    %94 = vmatpush1.bf16.msra.mxu0 0
    %95 = vmatprep.subr.bf16.mxu0 0
    %96 = vmatpush1.bf16.msra.mxu0 0
    %97 = vmatprep.subr.bf16.mxu0 0
    %98 = vmatpush1.bf16.msra.mxu0 0
    %99 = vmatprep.subr.bf16.mxu0 0
    %100 = vmatpush1.bf16.msra.mxu0 0
    %101 = vmatprep.subr.bf16.mxu0 0
    %102 = vmatpush1.bf16.msra.mxu0 0
    %103 = vmatprep.subr.bf16.mxu0 0
    %104 = vmatpush1.bf16.msra.mxu0 0
    %105 = vmatprep.subr.bf16.mxu0 0
    %106 = vmatpush1.bf16.msra.mxu0 0
    %107 = vmatprep.subr.bf16.mxu0 0
    %108 = vmatpush1.bf16.msra.mxu0 0
    %109 = vmatprep.mubr.bf16.mxu0 0
    %110 = vmatmul.mubr.bf16.gmra.mrb[0].mxu0 %v75
    %v111 = vpop.f32.mrb[0].mxu0
    %v112 = vadd.f32 %v66, %v111
    %v113 = vpop.f32.mrb[0].mxu0
    %v114 = vpop.f32.mrb[0].mxu0
    %v115 = vadd.f32 %v66, %v114
    %v116 = vpop.f32.mrb[0].mxu0
    %117 = vdwg.mxu0
    %v118 = vmax.f32 %v112, 0.0
    %v119 = vmax.f32 %v115, 0.0
    %v120 = vpack.c.bf16 %v119, %v118
    %v121 = vlaneseq
    %v122 = vshrl.u32 %v121, 7
    %v123 = vsub.s32 1, %v122
    %v124 = vrot.slane %v59, %v123
    %v141 = vunpack.c.l.b16 %v42
    %v142 = vunpack.c.l.b16 %v43
    %v143 = vunpack.c.l.b16 %v44
    %v144 = vunpack.c.l.b16 %v45
    %v145 = vunpack.c.l.b16 %v46
    %v146 = vunpack.c.l.b16 %v47
    %v147 = vunpack.c.l.b16 %v48
    %v148 = vunpack.c.l.b16 %v49
    %v149 = vunpack.c.l.b16 %v50
    %v150 = vunpack.c.l.b16 %v51
    %v151 = vunpack.c.l.b16 %v52
    %v152 = vunpack.c.l.b16 %v53
    %v153 = vunpack.c.l.b16 %v54
    %v154 = vunpack.c.l.b16 %v55
    %v155 = vunpack.c.l.b16 %v56
    %v156 = vunpack.c.l.b16 %v57
    %v157 = vpack.c.b16 %v142, %v141
    %v158 = vpack.c.b16 %v144, %v143
    %v159 = vpack.c.b16 %v146, %v145
    %v160 = vpack.c.b16 %v148, %v147
    %v161 = vpack.c.b16 %v150, %v149
    %v162 = vpack.c.b16 %v152, %v151
    %v163 = vpack.c.b16 %v154, %v153
    %v164 = vpack.c.b16 %v156, %v155
    %173 = vmatprep.subr.bf16.mxu0 0
    %174 = vmatpush1.bf16.msra.mxu0 %v157
    %175 = vmatprep.subr.bf16.mxu0 0
    %176 = vmatpush1.bf16.msra.mxu0 %v158
    %177 = vmatprep.subr.bf16.mxu0 0
    %178 = vmatpush1.bf16.msra.mxu0 %v159
    %179 = vmatprep.subr.bf16.mxu0 0
    %180 = vmatpush1.bf16.msra.mxu0 %v160
    %181 = vmatprep.subr.bf16.mxu0 0
    %182 = vmatpush1.bf16.msra.mxu0 %v161
    %183 = vmatprep.subr.bf16.mxu0 0
    %184 = vmatpush1.bf16.msra.mxu0 %v162
    %185 = vmatprep.subr.bf16.mxu0 0
    %186 = vmatpush1.bf16.msra.mxu0 %v163
    %187 = vmatprep.subr.bf16.mxu0 0
    %188 = vmatpush1.bf16.msra.mxu0 %v164
    %189 = vmatprep.subr.bf16.mxu0 0
    %190 = vmatpush1.bf16.msra.mxu0 0
    %191 = vmatprep.subr.bf16.mxu0 0
    %192 = vmatpush1.bf16.msra.mxu0 0
    %193 = vmatprep.subr.bf16.mxu0 0
    %194 = vmatpush1.bf16.msra.mxu0 0
    %195 = vmatprep.subr.bf16.mxu0 0
    %196 = vmatpush1.bf16.msra.mxu0 0
    %197 = vmatprep.subr.bf16.mxu0 0
    %198 = vmatpush1.bf16.msra.mxu0 0
    %199 = vmatprep.subr.bf16.mxu0 0
    %200 = vmatpush1.bf16.msra.mxu0 0
    %201 = vmatprep.subr.bf16.mxu0 0
    %202 = vmatpush1.bf16.msra.mxu0 0
    %203 = vmatprep.subr.bf16.mxu0 0
    %204 = vmatpush1.bf16.msra.mxu0 0
    %205 = vmatprep.mubr.bf16.mxu0 0
    %206 = vmatmul.mubr.bf16.gmra.mrb[0].mxu0 %v120
    %v207 = vpop.f32.mrb[0].mxu0
    %v208 = vadd.f32 %v124, %v207
    %v209 = vpop.f32.mrb[0].mxu0
    %v210 = vpop.f32.mrb[0].mxu0
    %v211 = vadd.f32 %v124, %v210
    %v212 = vpop.f32.mrb[0].mxu0
    %213 = vdwg.mxu0
    %v214 = vmax.f32 %v208, 0.0
    %v215 = vmax.f32 %v211, 0.0
    %v216 = vlaneseq
    %v217 = vshrl.u32 %v216, 7
    %v218 = vsub.s32 2, %v217
    %v219 = vrot.slane %v59, %v218
    %v220 = vmul.f32 %v214, %v219
    %v221 = vmul.f32 %v215, %v219
    %222 = vadd.xlane.f32.xlu0 %v220
    %v223 = vpop.xlane.xlu0 %222
    %224 = vadd.xlane.f32.xlu0 %v221
    %v225 = vpop.xlane.xlu0 %224
    %v226 = vlaneseq
    %v227 = vshrl.u32 %v226, 7
    %v228 = vsub.s32 4, %v227
    %v229 = vrot.slane %v59, %v228
    %v230 = vadd.f32 %v223, %v229
    %v231 = vadd.f32 %v225, %v229
    %v232 = vlaneseq
    %v233 = vshrl.u32 %v232, 7
    %v234 = vsub.s32 3, %v233
    %v235 = vrot.slane %v59, %v234
    %v236 = vmul.f32 %v214, %v235
    %v237 = vmul.f32 %v215, %v235
    %238 = vadd.xlane.f32.xlu0 %v236
    %v239 = vpop.xlane.xlu0 %238
    %240 = vadd.xlane.f32.xlu0 %v237
    %v241 = vpop.xlane.xlu0 %240
    %v242 = vadd.f32 %v239, %v229
    %v243 = vadd.f32 %v241, %v229
    %v244 = vmax.f32 %v242, 0.0
    %v245 = vmax.f32 %v243, 0.0
    %v246 = vand.u32 2147483647, %v242
    %v247 = vand.u32 2147483647, %v243
    %v248 = vsub.f32 0.0, %v246
    %v249 = vsub.f32 0.0, %v247
    %v250 = vmul.f32 %v248, 1.442695
    %v251 = vpow.pop %v250
    %v252 = vmul.f32 %v249, 1.442695
    %v253 = vpow.pop %v252
    %v254 = vadd.f32 %v251, 1.0
    %v255 = vadd.f32 %v253, 1.0
    %v256 = vlog2.pop %v254
    %v257 = vmul.f32 %v256, 0.6931472
    %v258 = vlog2.pop %v255
    %v259 = vmul.f32 %v258, 0.6931472
    %v260 = vadd.f32 %v244, %v257
    %v261 = vadd.f32 %v245, %v259
    %vm262 = vcmask 7168
    %263 = vst.msk [vmem:[%s2] sm:$0xff] %vm262, %v230
    %264 = vst.msk [vmem:[%s2 + $0x8] sm:$0xff] %vm262, %v231
    %vm265 = vcmask 15368
    %266 = vst.msk [vmem:[%s2] sm:$0xff] %vm265, %v260
    %267 = vst.msk [vmem:[%s2 + $0x8] sm:$0xff] %vm265, %v261
    // Predicated region
    $region18: #{tpu_custom_call.1} parent=1 // pred_check
      _
    $region19: #{tpu_custom_call.1} parent=1 // pred_check_branch
      %269 = sbr.rel (0) target = $region21
    $region20: #{tpu_custom_call.1} parent=1 // pred_region
      _
    $region21: #{tpu_custom_call.1} parent=1 // pred_fallthru
      _
    // Predicated region
    $region22: #{tpu_custom_call.1} parent=1 // pred_check
      _
    $region23: #{tpu_custom_call.1} parent=1 // pred_check_branch
      %271 = sbr.rel (0) target = $region25
    $region24: #{tpu_custom_call.1} parent=1 // pred_region
      _
    $region25: #{tpu_custom_call.1} parent=1 // pred_fallthru
      _
    %272 = vsyncpa [#allocation3], 1
    %273 = vsyncpa [#allocation5], 1

</llo_original>
